<compile_context>
chip_gen: v6e
topology: v6e:2x2x1
jax: 0.10.0
libtpu: 0.0.40
codegen_flags: <defaults>
</compile_context>

<pallas_src>
import jax
import jax.numpy as jnp
import numpy as np
from jax.experimental import pallas as pl
from jax.experimental.pallas import tpu as pltpu


# ----------------------------- hardware-aware sizing helpers -----------------------------

def _tpu_vmem_capacity_bytes():
    try:
        return int(pltpu.get_tpu_info().vmem_capacity_bytes)
    except Exception:
        pass
    try:
        if "v7" in jax.devices()[0].device_kind.lower():
            return 64 * 1024 * 1024          # v7x: 64 MiB VMEM per TensorCore
    except Exception:
        pass
    return 128 * 1024 * 1024                 # v5e / v6e


def _tpu_vmem_budget_bytes():
    # Half of physical VMEM, capped at 64 MiB: v5e/v6e -> 64 MiB, v7x -> 32 MiB.
    return min(_tpu_vmem_capacity_bytes() // 2, 64 * 1024 * 1024)


def _is_v7x():
    try:
        if "v7" in jax.devices()[0].device_kind.lower():
            return True
    except Exception:
        pass
    try:
        return int(pltpu.get_tpu_info().vmem_capacity_bytes) <= 64 * 1024 * 1024
    except Exception:
        return False


def _dim_semantics(B, n_tiles):
    """On v7x, split the busier grid axis across the 2 TensorCores (kernel is HBM-bound)."""
    core_par = getattr(pltpu, "CORE_PARALLEL", None)
    par = getattr(pltpu, "PARALLEL", "parallel")
    if core_par is not None and _is_v7x():
        if n_tiles >= B and n_tiles > 1:
            return (par, core_par)
        if B > 1:
            return (core_par, par)
    return ("parallel", "parallel")


def _pick_tn(HW, budget_bytes, C, F_, itemsize, input_buffers, tn_max):
    # VMEM bytes per lane of the tile (not just the double-buffered in/out tiles):
    #   input buffers (pipelined)            : input_buffers * C * itemsize
    #   output buffers (double-buffered)     : 2 * C * itemsize
    #   elementwise temps (x*se, *(sa+1))    : 2 * C * itemsize
    #   SA hidden h + relu temp + sa row     : 2 * F_ * 4 + 16
    per_lane = (input_buffers + 4) * C * itemsize + 2 * F_ * 4 + 16
    cap = int(budget_bytes * 3 // 4) // per_lane        # keep ~25% headroom
    cap = min(cap, tn_max)
    if HW <= max(cap, 128):
        return HW                                       # full spatial extent in one block
    cap = max(128, (cap // 128) * 128)
    # Prefer a 128-multiple that divides HW (lane-dense, unmasked stores; no ragged tail).
    t = cap
    while t >= max(128, cap // 2):
        if HW % t == 0:
            return t
        t -= 128
    return cap


# ----------------------------- fused dual-attention tail (Pallas) -----------------------------

def _da_tail_kernel(x_ref, se_ref, w1_ref, b1_ref, w2_ref, b2_ref, o_ref):
    # x_ref:  (C, tn)   conv activations, channels on sublanes, pixels on lanes (native dtype)
    # se_ref: (C, 1)    per-channel SE scale for this batch element (f32)
    # w1_ref: (F, C)    first 1x1 conv weight of the SA block (matches x dtype)
    # b1_ref: (F, 1)    its bias (f32)
    # w2_ref: (F, 1)    second 1x1 conv weight as a column (f32)
    # b2_ref: (1,)      its bias (SMEM scalar, f32)
    # o_ref:  (C, tn)   fused output tile
    x = x_ref[...]                                      # no eager full-tile f32 copy
    # SA hidden: tiny MXU matmul (M=F, K=C), f32 accumulate.  Left as-is: it sits ~20x
    # below the HBM bound; on v5e feed bf16 operands only if profiling shows it exposed.
    h = jnp.dot(w1_ref[...], x, preferred_element_type=jnp.float32) + b1_ref[...]
    h = jnp.maximum(h, 0.0)
    # Second 1x1 conv has M=1, K=F: VPU broadcast-mul + XLU sublane-sum instead of paying
    # MXU push/drain every grid step.
    y = jnp.sum(w2_ref[...] * h, axis=0, keepdims=True) + b2_ref[0]       # (1, tn) f32
    sa1 = (jax.nn.sigmoid(y) + 1.0).astype(x.dtype)                       # (1, tn)
    se = se_ref[...].astype(x.dtype)                                      # (C, 1)
    o_ref[...] = (x * se * sa1).astype(o_ref.dtype)


def dual_attention_tail(conv_nchw, se_scale, w1, b1, w2, b2,
                        *, tn_max=16384, input_buffers=3):
    """Fused out = conv * se[:, :, None, None] * (SA(conv) + 1).

    conv_nchw: (B, C, H, W) f32 or bf16; se_scale: (B, C); w1: (F, C); b1: (F,);
    w2: (1, F); b2: (1,).  Returns (B, C, H, W) in conv's dtype.
    bf16 I/O halves HBM bytes; the SA matmul always accumulates in f32.
    """
    B, C, H, W = conv_nchw.shape
    HW = H * W
    F_ = w1.shape[0]
    itemsize = np.dtype(conv_nchw.dtype).itemsize

    budget = _tpu_vmem_budget_bytes()
    tn = _pick_tn(HW, budget, C, F_, itemsize, input_buffers, tn_max)
    n_tiles = pl.cdiv(HW, tn)                 # partial tail block handled by masked writeback

    # NCHW is already channels-major per batch: this reshape is free (no HBM traffic).
    x_flat = conv_nchw.reshape(B, C, HW)
    se3 = se_scale.reshape(B, C, 1).astype(jnp.float32)
    w1f = w1.astype(conv_nchw.dtype)          # bf16 input -> bf16 MXU operands
    b1c = b1.reshape(F_, 1).astype(jnp.float32)
    w2c = w2.reshape(F_, 1).astype(jnp.float32)
    b2f = b2.reshape(1).astype(jnp.float32)

    ce = pl.CostEstimate(
        flops=int(2 * B * F_ * C * HW + 5 * B * C * HW),
        transcendentals=int(B * HW),
        bytes_accessed=int(2 * B * C * HW * itemsize),
    )
    dim_sems = _dim_semantics(B, n_tiles)

    def _call(in_spec, sems):
        return pl.pallas_call(
            _da_tail_kernel,
            out_shape=jax.ShapeDtypeStruct((B, C, HW), conv_nchw.dtype),
            grid=(B, n_tiles),
            in_specs=[
                in_spec,                                               # conv tile (batch squeezed)
                pl.BlockSpec((None, C, 1), lambda b, i: (b, 0, 0)),    # SE scale column for batch b
                pl.BlockSpec((F_, C), lambda b, i: (0, 0)),            # w1 (resident in VMEM)
                pl.BlockSpec((F_, 1), lambda b, i: (0, 0)),            # b1
                pl.BlockSpec((F_, 1), lambda b, i: (0, 0)),            # w2 column
                pl.BlockSpec(memory_space=pltpu.MemorySpace.SMEM),     # b2 scalar in SMEM
            ],
            out_specs=pl.BlockSpec((None, C, tn), lambda b, i: (b, 0, i)),
            compiler_params=pltpu.CompilerParams(
                dimension_semantics=sems,
                vmem_limit_bytes=int(budget)),
            cost_estimate=ce,
        )(x_flat, se3, w1f, b1c, w2c, b2f)

    base_spec = pl.BlockSpec((None, C, tn), lambda b, i: (b, 0, i))
    candidates = []
    if input_buffers > 2:
        try:
            buffered_spec = pl.BlockSpec((None, C, tn), lambda b, i: (b, 0, i),
                                         pipeline_mode=pl.Buffered(input_buffers))
            candidates.append((buffered_spec, dim_sems))
        except TypeError:
            pass
    candidates.append((base_spec, dim_sems))
    if dim_sems != ("parallel", "parallel"):
        candidates.append((base_spec, ("parallel", "parallel")))

    out_flat, last_err = None, None
    for spec, sems in candidates:
        try:
            out_flat = _call(spec, sems)
            break
        except Exception as e:            # fall back to plainer pipeline/semantics config
            last_err = e
    if out_flat is None:
        raise last_err

    return out_flat.reshape(B, C, H, W)


# ----------------------------- non-Pallas pieces of the module -----------------------------

def conv2d_3x3(x, w, b):
    # TODO(synk): 3x3 spatially-padded conv left to XLA (lax.conv); no hand-written Pallas conv here.
    y = jax.lax.conv_general_dilated(
        x, w, window_strides=(1, 1), padding=((1, 1), (1, 1)),
        dimension_numbers=("NCHW", "OIHW", "NCHW"))
    return y + b[None, :, None, None]


def pixel_shuffle(x, r):
    B, Cr2, H, W = x.shape
    C = Cr2 // (r * r)
    x = x.reshape(B, C, r, r, H, W)
    x = x.transpose(0, 1, 4, 2, 5, 3)
    return x.reshape(B, C, H * r, W * r)


def dual_attention_block(x, skip, p):
    """Forward of DualAttentionBlock. x: (B, in_feats, H, W); skip: (B, skip_out_feats, 2H, 2W)."""
    # da_block_head: Conv3x3 -> PixelShuffle(2) -> ReLU (inside ConvPixelShuffleReLU) -> ReLU
    up = jax.nn.relu(pixel_shuffle(conv2d_3x3(x, p["w_head"], p["b_head"]), 2))
    up = jax.nn.relu(up)
    up_c = jnp.concatenate([skip, up], axis=1)
    # shallow_conv
    conv = jax.nn.relu(conv2d_3x3(up_c, p["w_sh"], p["b_sh"]))
    # SEBlock channel attention (tiny (B,C) MLP, left in plain JAX).
    # Note: the literal PyTorch SEBlock applies nn.Linear to the (B,C,1,1) pooled tensor, which
    # errors for C>1; we implement the intended squeeze-to-(B,C) channel-MLP semantics.
    # TODO(synk): SE global-average-pool + 2-layer MLP kept in XLA; verify in a profile that the
    # pool fuses into the shallow_conv epilogue (otherwise conv pays an extra full HBM read).
    pooled = conv.mean(axis=(2, 3))                                         # (B, C)
    h = jax.nn.relu(pooled @ p["w_se1"].T + p["b_se1"])
    se = jax.nn.sigmoid(h @ p["w_se2"].T + p["b_se2"])                      # (B, C)
    # Fused Pallas tail: out = conv * se * (SA(conv) + 1)
    return dual_attention_tail(conv, se, p["w_sa1"], p["b_sa1"], p["w_sa2"], p["b_sa2"])


# ----------------------------- pure-JAX reference -----------------------------

def reference(x, skip, p):
    up = jax.nn.relu(jax.nn.relu(pixel_shuffle(conv2d_3x3(x, p["w_head"], p["b_head"]), 2)))
    up_c = jnp.concatenate([skip, up], axis=1)
    conv = jax.nn.relu(conv2d_3x3(up_c, p["w_sh"], p["b_sh"]))
    pooled = conv.mean(axis=(2, 3))
    se = jax.nn.sigmoid(jax.nn.relu(pooled @ p["w_se1"].T + p["b_se1"]) @ p["w_se2"].T + p["b_se2"])
    se_out = se[:, :, None, None] * conv
    h = jnp.einsum("fc,bchw->bfhw", p["w_sa1"], conv) + p["b_sa1"][None, :, None, None]
    h = jnp.maximum(h, 0.0)
    sa = jax.nn.sigmoid(jnp.einsum("of,bfhw->bohw", p["w_sa2"], h) + p["b_sa2"][None, :, None, None])
    return se_out * (sa + 1.0)


if __name__ == "__main__":
    key = jax.random.PRNGKey(0)
    B, in_feats, skip_out_feats, out_feats, H, W = 2, 8, 4, 32, 8, 8
    keys = jax.random.split(key, 16)

    x = jax.random.normal(keys[0], (B, in_feats, H, W), dtype=jnp.float32)
    skip = jax.random.normal(keys[1], (B, skip_out_feats, 2 * H, 2 * W), dtype=jnp.float32)

    p = {
        # ConvPixelShuffleReLU: Conv2d(in_feats, out_feats*4, 3, 1, 1)
        "w_head": jax.random.normal(keys[2], (out_feats * 4, in_feats, 3, 3), jnp.float32) * 0.05,
        "b_head": jax.random.normal(keys[3], (out_feats * 4,), jnp.float32) * 0.05,
        # shallow_conv: Conv2d(skip_out_feats + out_feats, out_feats, 3, 1, 1)
        "w_sh": jax.random.normal(keys[4], (out_feats, skip_out_feats + out_feats, 3, 3), jnp.float32) * 0.05,
        "b_sh": jax.random.normal(keys[5], (out_feats,), jnp.float32) * 0.05,
        # SEBlock(out_feats, ratio=16)
        "w_se1": jax.random.normal(keys[6], (out_feats // 16, out_feats), jnp.float32) * 0.1,
        "b_se1": jax.random.normal(keys[7], (out_feats // 16,), jnp.float32) * 0.1,
        "w_se2": jax.random.normal(keys[8], (out_feats, out_feats // 16), jnp.float32) * 0.1,
        "b_se2": jax.random.normal(keys[9], (out_feats,), jnp.float32) * 0.1,
        # SpatialAttentionBlock(out_feats, out_feats//4)
        "w_sa1": jax.random.normal(keys[10], (out_feats // 4, out_feats), jnp.float32) * 0.1,
        "b_sa1": jax.random.normal(keys[11], (out_feats // 4,), jnp.float32) * 0.1,
        "w_sa2": jax.random.normal(keys[12], (1, out_feats // 4), jnp.float32) * 0.1,
        "b_sa2": jax.random.normal(keys[13], (1,), jnp.float32) * 0.1,
    }

    # f32 end-to-end check (bit-exact multiply ordering vs. reference).
    out = dual_attention_block(x, skip, p)
    out = jax.block_until_ready(out)
    ref = reference(x, skip, p)
    assert out.shape == (B, out_feats, 2 * H, 2 * W), out.shape
    np.testing.assert_allclose(np.asarray(out), np.asarray(ref), rtol=2e-5, atol=2e-5)

    # bf16-I/O smoke test of the fused tail (halves HBM bytes on v6e/v7x; loose tolerance).
    up = jax.nn.relu(jax.nn.relu(pixel_shuffle(conv2d_3x3(x, p["w_head"], p["b_head"]), 2)))
    conv = jax.nn.relu(conv2d_3x3(jnp.concatenate([skip, up], axis=1), p["w_sh"], p["b_sh"]))
    pooled = conv.mean(axis=(2, 3))
    se = jax.nn.sigmoid(jax.nn.relu(pooled @ p["w_se1"].T + p["b_se1"]) @ p["w_se2"].T + p["b_se2"])
    tail_f32 = dual_attention_tail(conv, se, p["w_sa1"], p["b_sa1"], p["w_sa2"], p["b_sa2"])
    tail_bf16 = dual_attention_tail(conv.astype(jnp.bfloat16), se,
                                    p["w_sa1"], p["b_sa1"], p["w_sa2"], p["b_sa2"])
    tail_bf16 = jax.block_until_ready(tail_bf16)
    np.testing.assert_allclose(np.asarray(tail_bf16.astype(jnp.float32)),
                               np.asarray(tail_f32), rtol=5e-2, atol=5e-2)

    print("KERNEL_OK")
</pallas_src>

<mosaic_0001>
module attributes {stable_mosaic.version = 11 : i64} {
  func.func @_da_tail_kernel(%arg0: i32, %arg1: i32, %arg2: memref<1x32x256xf32, #tpu.memory_space<vmem>>, %arg3: memref<1x32x1xf32, #tpu.memory_space<vmem>>, %arg4: memref<8x32xf32, #tpu.memory_space<vmem>>, %arg5: memref<8x1xf32, #tpu.memory_space<vmem>>, %arg6: memref<8x1xf32, #tpu.memory_space<vmem>>, %arg7: memref<1xf32, #tpu.memory_space<smem>>, %arg8: memref<1x32x256xf32, #tpu.memory_space<vmem>>) attributes {dimension_semantics = [#tpu.dimension_semantics<parallel>, #tpu.dimension_semantics<parallel>], iteration_bounds = array<i64: 2, 1>, scalar_prefetch = 0 : i64, scratch_operands = 0 : i64, tpu.core_type = #tpu.core_type<tc>, window_params = [{transform_indices = @transform_0, window_bounds = array<i64: 1, 32, 256>}, {transform_indices = @transform_1, window_bounds = array<i64: 1, 32, 1>}, {pipeline_mode = #tpu.pipeline_mode<synchronous>, transform_indices = @transform_2, window_bounds = array<i64: 8, 32>}, {pipeline_mode = #tpu.pipeline_mode<synchronous>, transform_indices = @transform_3, window_bounds = array<i64: 8, 1>}, {pipeline_mode = #tpu.pipeline_mode<synchronous>, transform_indices = @transform_4, window_bounds = array<i64: 8, 1>}, {transform_indices = @transform_5, window_bounds = array<i64: 1>}, {transform_indices = @transform_6, window_bounds = array<i64: 1, 32, 256>}]} {
    %c0 = arith.constant 0 : index
    %c0_0 = arith.constant 0 : index
    %c0_1 = arith.constant 0 : index
    %0 = vector.load %arg2[%c0, %c0_0, %c0_1] : memref<1x32x256xf32, #tpu.memory_space<vmem>>, vector<1x32x256xf32>
    %1 = vector.shape_cast %0 : vector<1x32x256xf32> to vector<32x256xf32>
    %c0_2 = arith.constant 0 : index
    %c0_3 = arith.constant 0 : index
    %2 = vector.load %arg4[%c0_2, %c0_3] : memref<8x32xf32, #tpu.memory_space<vmem>>, vector<8x32xf32>
    %cst = arith.constant dense<0.000000e+00> : vector<8x256xf32>
    %3 = tpu.matmul %2, %1, %cst {dimension_numbers = #tpu.dot_dimension_numbers<[1], [0], [0], [1], [0, 0, 1, 1], [], []>} : vector<8x32xf32>, vector<32x256xf32>, vector<8x256xf32> -> vector<8x256xf32>
    %c0_4 = arith.constant 0 : index
    %c0_5 = arith.constant 0 : index
    %4 = vector.load %arg5[%c0_4, %c0_5] : memref<8x1xf32, #tpu.memory_space<vmem>>, vector<8x1xf32>
    %5 = vector.broadcast %4 : vector<8x1xf32> to vector<8x256xf32>
    %6 = arith.addf %3, %5 : vector<8x256xf32>
    %cst_6 = arith.constant 0.000000e+00 : f32
    %7 = vector.broadcast %cst_6 : f32 to vector<8x256xf32>
    %8 = arith.maximumf %6, %7 : vector<8x256xf32>
    %c0_7 = arith.constant 0 : index
    %c0_8 = arith.constant 0 : index
    %9 = vector.load %arg6[%c0_7, %c0_8] : memref<8x1xf32, #tpu.memory_space<vmem>>, vector<8x1xf32>
    %10 = vector.broadcast %9 : vector<8x1xf32> to vector<8x256xf32>
    %11 = arith.mulf %10, %8 : vector<8x256xf32>
    %cst_9 = arith.constant dense<0.000000e+00> : vector<256xf32>
    %12 = vector.multi_reduction <add>, %11, %cst_9 [0] : vector<8x256xf32> to vector<256xf32>
    %13 = vector.shape_cast %12 : vector<256xf32> to vector<1x256xf32>
    %c0_10 = arith.constant 0 : index
    %14 = memref.load %arg7[%c0_10] : memref<1xf32, #tpu.memory_space<smem>>
    %15 = vector.broadcast %14 : f32 to vector<1x256xf32>
    %16 = arith.addf %13, %15 : vector<1x256xf32>
    %17 = arith.negf %16 : vector<1x256xf32>
    %18 = math.exp %17 : vector<1x256xf32>
    %cst_11 = arith.constant 1.000000e+00 : f32
    %19 = vector.broadcast %cst_11 : f32 to vector<1x256xf32>
    %20 = arith.addf %19, %18 : vector<1x256xf32>
    %21 = arith.divf %19, %20 : vector<1x256xf32>
    %cst_12 = arith.constant 1.000000e+00 : f32
    %22 = vector.broadcast %cst_12 : f32 to vector<1x256xf32>
    %23 = arith.addf %21, %22 : vector<1x256xf32>
    %c0_13 = arith.constant 0 : index
    %c0_14 = arith.constant 0 : index
    %c0_15 = arith.constant 0 : index
    %24 = vector.load %arg3[%c0_13, %c0_14, %c0_15] : memref<1x32x1xf32, #tpu.memory_space<vmem>>, vector<1x32x1xf32>
    %25 = vector.shape_cast %24 : vector<1x32x1xf32> to vector<32x1xf32>
    %26 = vector.broadcast %25 : vector<32x1xf32> to vector<32x256xf32>
    %27 = arith.mulf %1, %26 : vector<32x256xf32>
    %28 = vector.broadcast %23 : vector<1x256xf32> to vector<32x256xf32>
    %29 = arith.mulf %27, %28 : vector<32x256xf32>
    %c0_16 = arith.constant 0 : index
    %c0_17 = arith.constant 0 : index
    %c0_18 = arith.constant 0 : index
    %30 = vector.load %arg8[%c0_16, %c0_17, %c0_18] : memref<1x32x256xf32, #tpu.memory_space<vmem>>, vector<1x32x256xf32>
    %31 = vector.shape_cast %30 : vector<1x32x256xf32> to vector<32x256xf32>
    %32 = vector.shape_cast %29 : vector<32x256xf32> to vector<1x32x256xf32>
    tpu.vector_store %arg8[%c0_16, %c0_17, %c0_18], %32 {strides = array<i32>} : memref<1x32x256xf32, #tpu.memory_space<vmem>>, vector<1x32x256xf32>,
    return
  }
  func.func @transform_0(%arg0: i32, %arg1: i32) -> (i32, i32, i32) {
    %c0_i32 = arith.constant 0 : i32
    %c0_i32_0 = arith.constant 0 : i32
    return %arg0, %c0_i32, %arg1 : i32, i32, i32
  }
  func.func @transform_1(%arg0: i32, %arg1: i32) -> (i32, i32, i32) {
    %c0_i32 = arith.constant 0 : i32
    %c0_i32_0 = arith.constant 0 : i32
    %c0_i32_1 = arith.constant 0 : i32
    return %arg0, %c0_i32, %c0_i32_0 : i32, i32, i32
  }
  func.func @transform_2(%arg0: i32, %arg1: i32) -> (i32, i32) {
    %c0_i32 = arith.constant 0 : i32
    %c0_i32_0 = arith.constant 0 : i32
    %c0_i32_1 = arith.constant 0 : i32
    return %c0_i32, %c0_i32_0 : i32, i32
  }
  func.func @transform_3(%arg0: i32, %arg1: i32) -> (i32, i32) {
    %c0_i32 = arith.constant 0 : i32
    %c0_i32_0 = arith.constant 0 : i32
    %c0_i32_1 = arith.constant 0 : i32
    return %c0_i32, %c0_i32_0 : i32, i32
  }
  func.func @transform_4(%arg0: i32, %arg1: i32) -> (i32, i32) {
    %c0_i32 = arith.constant 0 : i32
    %c0_i32_0 = arith.constant 0 : i32
    %c0_i32_1 = arith.constant 0 : i32
    return %c0_i32, %c0_i32_0 : i32, i32
  }
  func.func @transform_5(%arg0: i32, %arg1: i32) -> i32 {
    %c0_i32 = arith.constant 0 : i32
    %c0_i32_0 = arith.constant 0 : i32
    return %c0_i32 : i32
  }
  func.func @transform_6(%arg0: i32, %arg1: i32) -> (i32, i32, i32) {
    %c0_i32 = arith.constant 0 : i32
    %c0_i32_0 = arith.constant 0 : i32
    return %arg0, %c0_i32, %arg1 : i32, i32, i32
  }
}

</mosaic_0001>

<llo_original>
// kernel: tpu_custom_call.1
$region0: #{tpu_custom_call.1}
  #allocation0 [shape = 'u32[]', space=smem, size = 0x4, offset = 0x4, fixed_abs, tag = 'smem constant byte address 0x4 - core index']
  #allocation1 [shape = 'u32[144,128]{1,0:T(1,128)}', space=vmem, size = 0x12000, scoped, tag = 'internal scratch']
  #allocation2 [shape = 'f32[1]{0:T(128)S(6)}', space=smem, size = 0x200, scoped, tag = 'scoped memory for tpu_custom_call.1']
  %s0 = inlined_call_operand.hbm [shape: f32[2,32,256], index: 0, kind: input, shape index: {}]
  %s1 = inlined_call_operand.vmem [shape: f32[2,32,1], index: 1, kind: input, shape index: {}]
  %s2 = inlined_call_operand.vmem [shape: f32[8,32], index: 2, kind: input, shape index: {}]
  %s3 = inlined_call_operand.vmem [shape: f32[8,1], index: 3, kind: input, shape index: {}]
  %s4 = inlined_call_operand.vmem [shape: f32[8,1], index: 4, kind: input, shape index: {}]
  %s5 = inlined_call_operand.<no memory space> [shape: f32[1], index: 5, kind: input, shape index: {}]
  %s6 = inlined_call_operand.hbm [shape: f32[2,32,256], index: 6, kind: output, shape index: {}]
  %s7 = sld [smem:[#allocation0]]
  $region61: #{tpu_custom_call.1} parent=0
    _
  %s9 = ssub.s32 1, %s7
  %s10 = scalar_select 0, %s9, %s7
  %11 = sst [smem:[#allocation2]] %s5
  $region1: #{tpu_custom_call.1} parent=0
    #allocation3 [shape = 'u8[65536]{0}', space=vmem, size = 0x10000, scoped, tag = 'input window, operand 0']
    #allocation4 [shape = 's32[2]{0}', space=sflag, size = 0x8, scoped, tag = 'scoped memory for tpu_custom_call.1']
    #allocation5 [shape = 's32[2]{0}', space=sflag, size = 0x8, scoped, tag = 'scoped memory for tpu_custom_call.1']
    #allocation6 [shape = 'u8[65536]{0}', space=vmem, size = 0x10000, scoped, tag = 'output window, operand 0']
    %12 = vsyncpa [#allocation4], 0
    %s13 = scalar_lea.sflag [#allocation4], 1
    %14 = vsyncpa %s13, 0
    %15 = vsyncpa [#allocation5], 0
    %s16 = scalar_lea.sflag [#allocation5], 1
    %17 = vsyncpa %s16, 0
    loop: start=0, step=1, limit=4
    $region2: #{tpu_custom_call.1} parent=1 // loop_pre_header
      _
    $region3: #{tpu_custom_call.1} parent=1 // loop_header
      %s19 = sphi 0, %s23
      %p20 = scmp.ge.s32.totalorder %s19, 4
      %s26 = sphi 0, %s38
      %s27 = sphi 0, %s34
      %s28 = sphi 0, %s26
      %s29 = sphi 0, %s27
      %s30 = sphi 0, %s28
      %s31 = sphi 0, %s29
      %s43 = sphi 0, %s45
      %s46 = sphi 0, %s43
      %s47 = sphi 0, %s46
      %s63 = sphi 0, %s47
      %s69 = sphi 0, %s71
      %s72 = sphi 0, %s69
      %s73 = sphi 0, %s72
      %s89 = sphi 0, %s73
      %s93 = sphi 0, %s93
      %s95 = sphi 0, %s93
      %s96 = sphi 0, %s95
      %s110 = sphi 0, %s96
      %s114 = sphi 0, %s114
      %s116 = sphi 0, %s114
      %s117 = sphi 0, %s116
      %s131 = sphi 0, %s117
      %s135 = sphi 0, %s135
      %s137 = sphi 0, %s135
      %s138 = sphi 0, %s137
      %s152 = sphi 0, %s138
      %s156 = sphi 0, %s156
      %s158 = sphi 0, %s156
      %s159 = sphi 0, %s158
      %s173 = sphi 0, %s159
      %s181 = sphi 0, %s183
      %s184 = sphi 0, %s181
      %s185 = sphi 0, %s184
      %s201 = sphi 0, %s185
    $region4: #{tpu_custom_call.1} parent=1 // loop_header_branch
      %22 = sbr.rel (%p20) target = $region8
    $region5: #{tpu_custom_call.1} parent=1 // loop_body
      %s24 = ssub.s32 %s19, 1
      %s25 = ssub.s32 %s19, 2
      %s32 = sadd.s32 1, %s27
      %p33 = scmp.ge.s32.totalorder %s32, 1
      %s34 = scalar_select %p33, 0, %s32
      %s35 = sadd.s32 1, %s26
      %s36 = scalar_select %p33, %s35, %s26
      %p37 = scmp.ge.s32.totalorder %s36, 2
      %s38 = scalar_select %p37, 0, %s36
      %s39 = ssub.s32 %s26, %s38
      %s40 = ssub.s32 %s27, %s34
      %s41 = sor.u32 %s39, %s40
      %p42 = scmp.eq.s32.totalorder %s41, 0
      %s44 = sadd.s32 %s43, 1
      %s45 = scalar_select %p42, %s43, %s44
      %p48 = pneg %p42
      %p49 = scmp.eq.s32.totalorder %s19, 1
      %p50 = por %p48, %p49
      %p51 = scmp.ne.s32.totalorder %s43, %s46
      %p52 = scmp.eq.s32.totalorder %s19, 0
      %p53 = por %p51, %p52
      %p54 = scmp.ne.s32.totalorder %s43, %s46
      %p55 = scmp.eq.s32.totalorder %s24, 1
      %p56 = por %p54, %p55
      %p57 = scmp.ne.s32.totalorder %s46, %s47
      %p58 = scmp.eq.s32.totalorder %s24, 0
      %p59 = por %p57, %p58
      %p60 = scmp.ne.s32.totalorder %s46, %s47
      %p61 = scmp.eq.s32.totalorder %s25, 1
      %p62 = por %p60, %p61
      %p64 = scmp.ne.s32.totalorder %s47, %s63
      %p65 = scmp.eq.s32.totalorder %s25, 0
      %p66 = por %p64, %p65
      %s67 = ssub.s32 %s26, %s38
      %p68 = scmp.eq.s32.totalorder %s67, 0
      %s70 = sadd.s32 %s69, 1
      %s71 = scalar_select %p68, %s69, %s70
      %p74 = pneg %p68
      %p75 = scmp.eq.s32.totalorder %s19, 1
      %p76 = por %p74, %p75
      %p77 = scmp.ne.s32.totalorder %s69, %s72
      %p78 = scmp.eq.s32.totalorder %s19, 0
      %p79 = por %p77, %p78
      %p80 = scmp.ne.s32.totalorder %s69, %s72
      %p81 = scmp.eq.s32.totalorder %s24, 1
      %p82 = por %p80, %p81
      %p83 = scmp.ne.s32.totalorder %s72, %s73
      %p84 = scmp.eq.s32.totalorder %s24, 0
      %p85 = por %p83, %p84
      %p86 = scmp.ne.s32.totalorder %s72, %s73
      %p87 = scmp.eq.s32.totalorder %s25, 1
      %p88 = por %p86, %p87
      %p90 = scmp.ne.s32.totalorder %s73, %s89
      %p91 = scmp.eq.s32.totalorder %s25, 0
      %p92 = por %p90, %p91
      %s94 = sadd.s32 %s93, 1
      %p97 = scmp.eq.s32.totalorder %s19, 1
      %p98 = scmp.ne.s32.totalorder %s93, %s95
      %p99 = scmp.eq.s32.totalorder %s19, 0
      %p100 = por %p98, %p99
      %p101 = scmp.ne.s32.totalorder %s93, %s95
      %p102 = scmp.eq.s32.totalorder %s24, 1
      %p103 = por %p101, %p102
      %p104 = scmp.ne.s32.totalorder %s95, %s96
      %p105 = scmp.eq.s32.totalorder %s24, 0
      %p106 = por %p104, %p105
      %p107 = scmp.ne.s32.totalorder %s95, %s96
      %p108 = scmp.eq.s32.totalorder %s25, 1
      %p109 = por %p107, %p108
      %p111 = scmp.ne.s32.totalorder %s96, %s110
      %p112 = scmp.eq.s32.totalorder %s25, 0
      %p113 = por %p111, %p112
      %s115 = sadd.s32 %s114, 1
      %p118 = scmp.eq.s32.totalorder %s19, 1
      %p119 = scmp.ne.s32.totalorder %s114, %s116
      %p120 = scmp.eq.s32.totalorder %s19, 0
      %p121 = por %p119, %p120
      %p122 = scmp.ne.s32.totalorder %s114, %s116
      %p123 = scmp.eq.s32.totalorder %s24, 1
      %p124 = por %p122, %p123
      %p125 = scmp.ne.s32.totalorder %s116, %s117
      %p126 = scmp.eq.s32.totalorder %s24, 0
      %p127 = por %p125, %p126
      %p128 = scmp.ne.s32.totalorder %s116, %s117
      %p129 = scmp.eq.s32.totalorder %s25, 1
      %p130 = por %p128, %p129
      %p132 = scmp.ne.s32.totalorder %s117, %s131
      %p133 = scmp.eq.s32.totalorder %s25, 0
      %p134 = por %p132, %p133
      %s136 = sadd.s32 %s135, 1
      %p139 = scmp.eq.s32.totalorder %s19, 1
      %p140 = scmp.ne.s32.totalorder %s135, %s137
      %p141 = scmp.eq.s32.totalorder %s19, 0
      %p142 = por %p140, %p141
      %p143 = scmp.ne.s32.totalorder %s135, %s137
      %p144 = scmp.eq.s32.totalorder %s24, 1
      %p145 = por %p143, %p144
      %p146 = scmp.ne.s32.totalorder %s137, %s138
      %p147 = scmp.eq.s32.totalorder %s24, 0
      %p148 = por %p146, %p147
      %p149 = scmp.ne.s32.totalorder %s137, %s138
      %p150 = scmp.eq.s32.totalorder %s25, 1
      %p151 = por %p149, %p150
      %p153 = scmp.ne.s32.totalorder %s138, %s152
      %p154 = scmp.eq.s32.totalorder %s25, 0
      %p155 = por %p153, %p154
      %s157 = sadd.s32 %s156, 1
      %p160 = scmp.eq.s32.totalorder %s19, 1
      %p161 = scmp.ne.s32.totalorder %s156, %s158
      %p162 = scmp.eq.s32.totalorder %s19, 0
      %p163 = por %p161, %p162
      %p164 = scmp.ne.s32.totalorder %s156, %s158
      %p165 = scmp.eq.s32.totalorder %s24, 1
      %p166 = por %p164, %p165
      %p167 = scmp.ne.s32.totalorder %s158, %s159
      %p168 = scmp.eq.s32.totalorder %s24, 0
      %p169 = por %p167, %p168
      %p170 = scmp.ne.s32.totalorder %s158, %s159
      %p171 = scmp.eq.s32.totalorder %s25, 1
      %p172 = por %p170, %p171
      %p174 = scmp.ne.s32.totalorder %s159, %s173
      %p175 = scmp.eq.s32.totalorder %s25, 0
      %p176 = por %p174, %p175
      %s177 = ssub.s32 %s26, %s38
      %s178 = ssub.s32 %s27, %s34
      %s179 = sor.u32 %s177, %s178
      %p180 = scmp.eq.s32.totalorder %s179, 0
      %s182 = sadd.s32 %s181, 1
      %s183 = scalar_select %p180, %s181, %s182
      %p186 = pneg %p180
      %p187 = scmp.eq.s32.totalorder %s19, 1
      %p188 = por %p186, %p187
      %p189 = scmp.ne.s32.totalorder %s181, %s184
      %p190 = scmp.eq.s32.totalorder %s19, 0
      %p191 = por %p189, %p190
      %p192 = scmp.ne.s32.totalorder %s181, %s184
      %p193 = scmp.eq.s32.totalorder %s24, 1
      %p194 = por %p192, %p193
      %p195 = scmp.ne.s32.totalorder %s184, %s185
      %p196 = scmp.eq.s32.totalorder %s24, 0
      %p197 = por %p195, %p196
      %p198 = scmp.ne.s32.totalorder %s184, %s185
      %p199 = scmp.eq.s32.totalorder %s25, 1
      %p200 = por %p198, %p199
      %p202 = scmp.ne.s32.totalorder %s185, %s201
      %p203 = scmp.eq.s32.totalorder %s25, 0
      %p204 = por %p202, %p203
      %p205 = scmp.le.s32.totalorder 1, %s19
      %p206 = scmp.lt.s32.totalorder %s19, 3
      %p207 = pnand %p205, %p206
      %p208 = pneg %p207
      // Predicated region
      $region9: #{tpu_custom_call.1} parent=5 // pred_check
        _
      $region10: #{tpu_custom_call.1} parent=5 // pred_check_branch
        %210 = sbr.rel (%p207) target = $region12
      $region11: #{tpu_custom_call.1} parent=5 // pred_region
        %s211 = ssub.s32 %s19, 1
        // Predicated region
        $region13: #{tpu_custom_call.1} parent=11 // pred_check
          %p212 = pneg %p106
        $region14: #{tpu_custom_call.1} parent=11 // pred_check_branch
          %214 = sbr.rel (%p212) target = $region16
        $region15: #{tpu_custom_call.1} parent=11 // pred_region
          _
        $region16: #{tpu_custom_call.1} parent=11 // pred_fallthru
          _
        // Predicated region
        $region17: #{tpu_custom_call.1} parent=11 // pred_check
          %p215 = pneg %p127
        $region18: #{tpu_custom_call.1} parent=11 // pred_check_branch
          %217 = sbr.rel (%p215) target = $region20
        $region19: #{tpu_custom_call.1} parent=11 // pred_region
          _
        $region20: #{tpu_custom_call.1} parent=11 // pred_fallthru
          _
        // Predicated region
        $region21: #{tpu_custom_call.1} parent=11 // pred_check
          %p218 = pneg %p148
        $region22: #{tpu_custom_call.1} parent=11 // pred_check_branch
          %220 = sbr.rel (%p218) target = $region24
        $region23: #{tpu_custom_call.1} parent=11 // pred_region
          _
        $region24: #{tpu_custom_call.1} parent=11 // pred_fallthru
          _
        // Predicated region
        $region25: #{tpu_custom_call.1} parent=11 // pred_check
          %p221 = pneg %p169
        $region26: #{tpu_custom_call.1} parent=11 // pred_check_branch
          %223 = sbr.rel (%p221) target = $region28
        $region27: #{tpu_custom_call.1} parent=11 // pred_region
          _
        $region28: #{tpu_custom_call.1} parent=11 // pred_fallthru
          _
      $region12: #{tpu_custom_call.1} parent=5 // pred_fallthru
        _
      %p224 = scmp.lt.s32.totalorder %s19, 2
      // Predicated region
      $region29: #{tpu_custom_call.1} parent=5 // pred_check
        %p225 = pneg %p224
      $region30: #{tpu_custom_call.1} parent=5 // pred_check_branch
        %227 = sbr.rel (%p225) target = $region32
      $region31: #{tpu_custom_call.1} parent=5 // pred_region
        // Predicated region
        $region33: #{tpu_custom_call.1} parent=31 // pred_check
          %p228 = pneg %p53
        $region34: #{tpu_custom_call.1} parent=31 // pred_check_branch
          %230 = sbr.rel (%p228) target = $region36
        $region35: #{tpu_custom_call.1} parent=31 // pred_region
          %s231 = sand.u32 %s43, 1
          %s232 = scalar_lea.sflag [#allocation4], %s231
          %s233 = sand.u32 %s43, 1
          %s234 = smul.addr %s233, 64
          %s235 = scalar_lea.vmem [#allocation3], %s234
          %s236 = smul.u32 2, %s27
          %s238 = ssub.s32 1024, 1024
          %239 = vsyncadd %s232, %s238
          %s240 = smul.addr %s26, 8
          %s241 = sadd.s32 %s236, %s240
          %s242 = smul.addr %s241, 128
          %s243 = scalar_lea.hbm %s0, %s242
          %s244 = sshll.u32 %s235, 4
          %s245 = int_to_ptr.vmem [resolvable:$true] %s244
          %250 = dma.hbm_to_vmem [thread:$0]  %s243, 1024, %s245, %s232, 256, 256, 16
        $region36: #{tpu_custom_call.1} parent=31 // pred_fallthru
          _
        // Predicated region
        $region37: #{tpu_custom_call.1} parent=31 // pred_check
          %p251 = pneg %p79
        $region38: #{tpu_custom_call.1} parent=31 // pred_check_branch
          %253 = sbr.rel (%p251) target = $region40
        $region39: #{tpu_custom_call.1} parent=31 // pred_region
          %p254 = scmp.lt.s32.totalorder %s26, 1
          %s255 = scalar_select %p254, %s26, 1
          %s256 = smul.addr %s255, 4
          %s257 = smul.addr %s256, 8
          %s258 = scalar_lea.vmem %s1, %s257
        $region40: #{tpu_custom_call.1} parent=31 // pred_fallthru
          _
      $region32: #{tpu_custom_call.1} parent=5 // pred_fallthru
        _
      %p259 = scmp.le.s32.totalorder 1, %s19
      %p260 = scmp.lt.s32.totalorder %s19, 3
      %p261 = pnand %p259, %p260
      %p262 = pneg %p261
      // Predicated region
      $region41: #{tpu_custom_call.1} parent=5 // pred_check
        _
      $region42: #{tpu_custom_call.1} parent=5 // pred_check_branch
        %264 = sbr.rel (%p261) target = $region44
      $region43: #{tpu_custom_call.1} parent=5 // pred_region
        %s265 = ssub.s32 %s19, 1
        %s266 = sand.u32 %s46, 1
        %s267 = scalar_lea.sflag [#allocation4], %s266
        %s268 = sand.u32 %s46, 1
        %s269 = smul.addr %s268, 64
        %s270 = scalar_lea.vmem [#allocation3], %s269
        // Predicated region
        $region45: #{tpu_custom_call.1} parent=43 // pred_check
          %p271 = pneg %p59
        $region46: #{tpu_custom_call.1} parent=43 // pred_check_branch
          %273 = sbr.rel (%p271) target = $region48
        $region47: #{tpu_custom_call.1} parent=43 // pred_region
          %274 = dma.done %s267, 1024
        $region48: #{tpu_custom_call.1} parent=43 // pred_fallthru
          _
        %s275 = sand.u32 %s46, 1
        %s276 = scalar_lea.sflag [#allocation4], %s275
        %s277 = sand.u32 %s46, 1
        %s278 = smul.addr %s277, 64
        %s279 = scalar_lea.vmem [#allocation3], %s278
        %p280 = pneg %p59
        %p281 = pneg %p56
        %p282 = scmp.lt.s32.totalorder %s28, 1
        %s283 = scalar_select %p282, %s28, 1
        %s284 = smul.addr %s283, 4
        %s285 = smul.addr %s284, 8
        %s286 = scalar_lea.vmem %s1, %s285
        %p287 = pneg %p85
        %p288 = pneg %p82
        %p289 = pneg %p106
        %p290 = pneg %p103
        %p291 = pneg %p127
        %p292 = pneg %p124
        %p293 = pneg %p148
        %p294 = pneg %p145
        %p295 = pneg %p169
        %p296 = pneg %p166
        %p297 = pneg %p197
        %p298 = pneg %p194
        %s299 = sand.u32 %s184, 1
        %s300 = scalar_lea.sflag [#allocation5], %s299
        %s301 = sand.u32 %s184, 1
        %s302 = smul.addr %s301, 64
        %s303 = scalar_lea.vmem [#allocation6], %s302
        %s304 = smul.u32 2, %s29
        %p305 = scmp.lt.s32.totalorder %s28, 1
        %s306 = scalar_select %p305, %s28, 1
        %s307 = smul.addr %s306, 4
        %s308 = smul.addr %s307, 8
        %s309 = scalar_lea.vmem %s1, %s308
        %s310 = smul.u32 2, %s29
        %v311 = vld [vmem:[%s270] sm:$0xff]
        %v312 = vld [vmem:[%s270 + $0x8] sm:$0xff]
        %v313 = vld [vmem:[%s270 + $0x10] sm:$0xff]
        %v314 = vld [vmem:[%s270 + $0x18] sm:$0xff]
        %v315 = vld [vmem:[%s270 + $0x20] sm:$0xff]
        %v316 = vld [vmem:[%s270 + $0x28] sm:$0xff]
        %v317 = vld [vmem:[%s270 + $0x30] sm:$0xff]
        %v318 = vld [vmem:[%s270 + $0x38] sm:$0xff]
        %v319 = vld [vmem:[%s2] sm:$0xff]
        %v320 = vld [vmem:[%s3] sm:$0xff]
        %322 = vset.pattern.permute.xlu0 0
        %323 = vperm.xlu0 %322, %v320
        %v324 = vpop.permute.xlu0 %323
        %vm326 = vcmask 261120
        %v328 = vsel %vm326, %v319, 0
        %330 = vmatprep.subr.mxu0 0.0
        %331 = vmatpush1.msra.mxu0 0.0
        %332 = vmatprep.subr.mxu0 0.0
        %333 = vmatpush1.msra.mxu0 0.0
        %334 = vmatprep.subr.mxu0 0.0
        %335 = vmatpush1.msra.mxu0 0.0
        %336 = vmatprep.subr.mxu0 0.0
        %337 = vmatpush1.msra.mxu0 0.0
        %338 = vmatprep.subr.mxu0 0.0
        %339 = vmatpush1.msra.mxu0 0.0
        %340 = vmatprep.subr.mxu0 0.0
        %341 = vmatpush1.msra.mxu0 0.0
        %342 = vmatprep.subr.mxu0 0.0
        %343 = vmatpush1.msra.mxu0 0.0
        %344 = vmatprep.subr.mxu0 0.0
        %345 = vmatpush1.msra.mxu0 0.0
        %346 = vmatprep.subr.mxu0 0.0
        %347 = vmatpush1.msra.mxu0 0.0
        %348 = vmatprep.subr.mxu0 0.0
        %349 = vmatpush1.msra.mxu0 0.0
        %350 = vmatprep.subr.mxu0 0.0
        %351 = vmatpush1.msra.mxu0 0.0
        %352 = vmatprep.subr.mxu0 0.0
        %353 = vmatpush1.msra.mxu0 0.0
        %354 = vmatprep.subr.mxu0 %v318
        %355 = vmatpush1.msra.mxu0 %v317
        %356 = vmatprep.subr.mxu0 %v316
        %357 = vmatpush1.msra.mxu0 %v315
        %358 = vmatprep.subr.mxu0 %v314
        %359 = vmatpush1.msra.mxu0 %v313
        %360 = vmatprep.subr.mxu0 %v312
        %361 = vmatpush1.msra.mxu0 %v311
        %362 = vmatprep.subr.mxu0 0.0
        %363 = vmatpush2.msra.mxu0 0.0
        %364 = vmatprep.subr.mxu0 0.0
        %365 = vmatpush2.msra.mxu0 0.0
        %366 = vmatprep.subr.mxu0 0.0
        %367 = vmatpush2.msra.mxu0 0.0
        %368 = vmatprep.subr.mxu0 0.0
        %369 = vmatpush2.msra.mxu0 0.0
        %370 = vmatprep.subr.mxu0 0.0
        %371 = vmatpush2.msra.mxu0 0.0
        %372 = vmatprep.subr.mxu0 0.0
        %373 = vmatpush2.msra.mxu0 0.0
        %374 = vmatprep.subr.mxu0 0.0
        %375 = vmatpush2.msra.mxu0 0.0
        %376 = vmatprep.subr.mxu0 0.0
        %377 = vmatpush2.msra.mxu0 0.0
        %378 = vmatprep.subr.mxu0 0.0
        %379 = vmatpush2.msra.mxu0 0.0
        %380 = vmatprep.subr.mxu0 0.0
        %381 = vmatpush2.msra.mxu0 0.0
        %382 = vmatprep.subr.mxu0 0.0
        %383 = vmatpush2.msra.mxu0 0.0
        %384 = vmatprep.subr.mxu0 0.0
        %385 = vmatpush2.msra.mxu0 0.0
        %386 = vmatprep.subr.mxu0 0.0
        %387 = vmatpush2.msra.mxu0 0.0
        %388 = vmatprep.subr.mxu0 0.0
        %389 = vmatpush2.msra.mxu0 0.0
        %390 = vmatprep.subr.mxu0 0.0
        %391 = vmatpush2.msra.mxu0 0.0
        %392 = vmatprep.subr.mxu0 0.0
        %393 = vmatpush2.msra.mxu0 0.0
        %394 = vmatprep.mubr.f32.mxu0 0.0
        %395 = vmatmul.mubr.f32.gmra.mxu0 %v328
        %v396 = vpop.f32.mrf.mxu0
        %v397 = vadd.f32 %v324, %v396
        %v398 = vpop.f32.mrf.mxu0
        %v399 = vadd.f32 %v324, %v398
        %400 = vdwg.mxu0
        %v401 = vmax.f32 %v397, 0.0
        %v402 = vmax.f32 %v399, 0.0
        %v403 = vld [vmem:[%s4] sm:$0xff]
        %405 = vset.pattern.permute.xlu0 0
        %406 = vperm.xlu0 %405, %v403
        %v407 = vpop.permute.xlu0 %406
        %v409 = vmul.f32 %v407, %v401
        %v410 = vmul.f32 %v407, %v402
        %v411 = vrot.slane %v409, 4
        %v412 = vadd.f32 %v409, %v411
        %v413 = vrot.slane %v412, 2
        %v414 = vadd.f32 %v412, %v413
        %v415 = vrot.slane %v414, 1
        %v416 = vadd.f32 %v414, %v415
        %v417 = vrot.slane %v410, 4
        %v418 = vadd.f32 %v410, %v417
        %v419 = vrot.slane %v418, 2
        %v420 = vadd.f32 %v418, %v419
        %v421 = vrot.slane %v420, 1
        %v422 = vadd.f32 %v420, %v421
        %s423 = sld [smem:[#allocation2]]
        %v424 = vstv %s423
        %v425 = vadd.f32 %v416, %v424
        %v426 = vadd.f32 %v422, %v424
        %v427 = vxor.u32 %v425, 2147483648
        %v428 = vxor.u32 %v426, 2147483648
        %v429 = vmul.f32 %v427, 1.442695
        %v430 = vpow.pop %v429
        %v431 = vmul.f32 %v428, 1.442695
        %v432 = vpow.pop %v431
        %v433 = vadd.f32 %v430, 1.0
        %v434 = vadd.f32 %v432, 1.0
        %v435 = vrcp.pop %v433
        %v436 = vmul.f32 1.0, %v435
        %v437 = vrcp.pop %v434
        %v438 = vmul.f32 1.0, %v437
        %v439 = vadd.f32 %v436, 1.0
        %v440 = vadd.f32 %v438, 1.0
        %v441 = vld [vmem:[%s309] sm:$0xff]
        %v442 = vld [vmem:[%s309 + $0x8] sm:$0xff]
        %v443 = vld [vmem:[%s309 + $0x10] sm:$0xff]
        %v444 = vld [vmem:[%s309 + $0x18] sm:$0xff]
        %446 = vset.pattern.permute.xlu0 0
        %447 = vperm.xlu0 %446, %v441
        %v448 = vpop.permute.xlu0 %447
        %451 = vset.pattern.permute.xlu0 0
        %452 = vperm.xlu0 %451, %v442
        %v453 = vpop.permute.xlu0 %452
        %456 = vset.pattern.permute.xlu0 0
        %457 = vperm.xlu0 %456, %v443
        %v458 = vpop.permute.xlu0 %457
        %461 = vset.pattern.permute.xlu0 0
        %462 = vperm.xlu0 %461, %v444
        %v463 = vpop.permute.xlu0 %462
        %v465 = vmul.f32 %v311, %v448
        %v466 = vmul.f32 %v312, %v448
        %v467 = vmul.f32 %v313, %v453
        %v468 = vmul.f32 %v314, %v453
        %v469 = vmul.f32 %v315, %v458
        %v470 = vmul.f32 %v316, %v458
        %v471 = vmul.f32 %v317, %v463
        %v472 = vmul.f32 %v318, %v463
        %v473 = vmul.f32 %v465, %v439
        %v474 = vmul.f32 %v466, %v440
        %v475 = vmul.f32 %v467, %v439
        %v476 = vmul.f32 %v468, %v440
        %v477 = vmul.f32 %v469, %v439
        %v478 = vmul.f32 %v470, %v440
        %v479 = vmul.f32 %v471, %v439
        %v480 = vmul.f32 %v472, %v440
        %481 = vst [vmem:[%s303] sm:$0xff] %v473
        %482 = vst [vmem:[%s303 + $0x8] sm:$0xff] %v474
        %483 = vst [vmem:[%s303 + $0x10] sm:$0xff] %v475
        %484 = vst [vmem:[%s303 + $0x18] sm:$0xff] %v476
        %485 = vst [vmem:[%s303 + $0x20] sm:$0xff] %v477
        %486 = vst [vmem:[%s303 + $0x28] sm:$0xff] %v478
        %487 = vst [vmem:[%s303 + $0x30] sm:$0xff] %v479
        %488 = vst [vmem:[%s303 + $0x38] sm:$0xff] %v480
        %s489 = sand.u32 %s184, 1
        %s490 = scalar_lea.sflag [#allocation5], %s489
        %s491 = sand.u32 %s184, 1
        %s492 = smul.addr %s491, 64
        %s493 = scalar_lea.vmem [#allocation6], %s492
        // Predicated region
        $region49: #{tpu_custom_call.1} parent=43 // pred_check
          %p494 = pneg %p194
        $region50: #{tpu_custom_call.1} parent=43 // pred_check_branch
          %496 = sbr.rel (%p494) target = $region52
        $region51: #{tpu_custom_call.1} parent=43 // pred_region
          %s497 = smul.u32 2, %s29
          %s499 = ssub.s32 1024, 1024
          %500 = vsyncadd %s490, %s499
          %s501 = smul.addr %s28, 8
          %s502 = sadd.s32 %s497, %s501
          %s503 = smul.addr %s502, 128
          %s504 = scalar_lea.hbm %s6, %s503
          %s505 = sshll.u32 %s493, 4
          %s506 = int_to_ptr.vmem [resolvable:$true] %s505
          %511 = dma.vmem_to_hbm [thread:$0]  %s506, 1024, %s504, %s490, 256, 256, 16
        $region52: #{tpu_custom_call.1} parent=43 // pred_fallthru
          _
      $region44: #{tpu_custom_call.1} parent=5 // pred_fallthru
        _
      %p512 = scmp.le.s32.totalorder 2, %s19
      // Predicated region
      $region53: #{tpu_custom_call.1} parent=5 // pred_check
        %p513 = pneg %p512
      $region54: #{tpu_custom_call.1} parent=5 // pred_check_branch
        %515 = sbr.rel (%p513) target = $region56
      $region55: #{tpu_custom_call.1} parent=5 // pred_region
        %s516 = ssub.s32 %s19, 2
        // Predicated region
        $region57: #{tpu_custom_call.1} parent=55 // pred_check
          %p517 = pneg %p200
        $region58: #{tpu_custom_call.1} parent=55 // pred_check_branch
          %519 = sbr.rel (%p517) target = $region60
        $region59: #{tpu_custom_call.1} parent=55 // pred_region
          %s520 = sand.u32 %s185, 1
          %s521 = scalar_lea.sflag [#allocation5], %s520
          %s522 = sand.u32 %s185, 1
          %s523 = smul.addr %s522, 64
          %s524 = scalar_lea.vmem [#allocation6], %s523
          %525 = dma.done %s521, 1024
        $region60: #{tpu_custom_call.1} parent=55 // pred_fallthru
          _
      $region56: #{tpu_custom_call.1} parent=5 // pred_fallthru
        _
    $region6: #{tpu_custom_call.1} parent=1 // loop_footer
      %s23 = sadd.s32 1, %s19
    $region7: #{tpu_custom_call.1} parent=1 // loop_footer_branch
      %18 = sbr.rel target = $region3
    $region8: #{tpu_custom_call.1} parent=1 // loop_exit
      _
    %526 = vsyncpa [#allocation4], 1
    %s527 = scalar_lea.sflag [#allocation4], 1
    %528 = vsyncpa %s527, 1
    %529 = vsyncpa [#allocation5], 1
    %s530 = scalar_lea.sflag [#allocation5], 1
    %531 = vsyncpa %s530, 1

</llo_original>
